<compile_context>
chip_gen: v7x
topology: tpu7x:2x2x1
jax: 0.10.0
libtpu: 0.0.40
codegen_flags: <defaults>
</compile_context>

<pallas_src>
import jax
import jax.numpy as jnp
from jax.experimental import pallas as pl
from jax.experimental.pallas import tpu as pltpu


# --------------------------------------------------------------------------- #
# Helpers
# --------------------------------------------------------------------------- #
def _round_up(x, m):
    return pl.cdiv(x, m) * m


def _choose_block_b(B, d_in, h2, a_pad,
                    vmem_budget_bytes=20 << 20, max_block=1024):
    """Pick a batch tile: biggest tile that fits a conservative VMEM budget,
    capped at 1024 rows (B > 1024 -> >=2 parallel blocks, feeds v7x's 2nd TC;
    on 1-TC chips the extra serial steps cost ~0.35us each — negligible)."""
    # Resident constants (double-buffered by BlockSpec): W1, b1, W2, b2 (all f32).
    weight_bytes = 2 * 4 * (d_in * h2 + h2 + h2 * a_pad + a_pad)
    # Per-row bytes: x tile (x2 buffers) + h intermediate (x2 headroom) + out (x2).
    per_row = 4 * (2 * d_in + 2 * h2 + 2 * a_pad)
    avail = max(vmem_budget_bytes - weight_bytes, 8 * per_row)
    cap = max(8, (avail // per_row) // 8 * 8)
    return int(min(_round_up(B, 8), max_block, cap))


# --------------------------------------------------------------------------- #
# Kernel: both branches fused — two MXU passes, biases added in-kernel
# --------------------------------------------------------------------------- #
def actor_critic_kernel(x_ref, w1_ref, b1_ref, w2_ref, b2_ref, out_ref):
    """
    x_ref  : [TB, D_in]     f32  (raw state tile, no wrapper-side repacking)
    w1_ref : [D_in, 2H]     f32  cols [:H] = actor layer-1, [H:] = critic layer-1
    b1_ref : [1, 2H]        f32
    w2_ref : [2H, A_pad]    f32  block diagonal: [:H,:A] = w_pi, [H:, A:A+1] = w_v
    b2_ref : [1, A_pad]     f32
    out_ref: [TB, A_pad]    f32  [:, :A] = pi logits, [:, A] = value
    """
    # Layer 1 (both branches in one MXU pass), f32 accumulate, bias + ReLU on VPU.
    h = jnp.dot(x_ref[...], w1_ref[...], preferred_element_type=jnp.float32)
    h = jnp.maximum(h + b1_ref[...], 0.0)

    # Layer 2 (pi head + v head in one MXU pass via block-diagonal weights).
    out = jnp.dot(h, w2_ref[...], preferred_element_type=jnp.float32) + b2_ref[...]
    out_ref[...] = out.astype(out_ref.dtype)


# --------------------------------------------------------------------------- #
# Parameter packing (branch fusion; biases kept as explicit vectors)
# --------------------------------------------------------------------------- #
def pack_params(p):
    D_in, H = p["w_pi1"].shape
    A = p["w_pi"].shape[1]
    A_pad = int(_round_up(A + 1, 8))          # slightly denser output stores

    w1 = jnp.concatenate([p["w_pi1"], p["w_v1"]], axis=1)      # [D_in, 2H]
    b1 = jnp.concatenate([p["b_pi1"], p["b_v1"]], axis=1)      # [1, 2H]

    w2 = jnp.zeros((2 * H, A_pad), jnp.float32)                # block diagonal
    w2 = w2.at[:H, :A].set(p["w_pi"])
    w2 = w2.at[H:, A:A + 1].set(p["w_v"])
    b2 = jnp.zeros((1, A_pad), jnp.float32)
    b2 = b2.at[0, :A].set(p["b_pi"][0])
    b2 = b2.at[0, A].set(p["b_v"][0, 0])

    return (w1.astype(jnp.float32), b1.astype(jnp.float32),
            w2.astype(jnp.float32), b2.astype(jnp.float32))


# --------------------------------------------------------------------------- #
# Forward wrapper
# --------------------------------------------------------------------------- #
def actor_critic_forward(state, packed, n_actions, block_b=None):
    """state: [B, D_in] f32. Returns (pi [B, n_actions] f32, v [B, 1] f32)."""
    w1, b1, w2, b2 = packed
    B, D_in = state.shape
    H2 = w1.shape[1]          # 2H
    A_pad = w2.shape[1]       # round_up(n_actions + 1, 8)

    if block_b is None:
        block_b = _choose_block_b(B, D_in, H2, A_pad)
    block_b = int(max(8, min(_round_up(block_b, 8), _round_up(B, 8))))

    # cdiv grid + zero-padding: never a single oversized block, always pipelined.
    Bp = int(_round_up(B, block_b))
    x = state if Bp == B else jnp.pad(state, ((0, Bp - B), (0, 0)))
    grid = (Bp // block_b,)

    flops = 2 * Bp * (D_in * H2 + H2 * A_pad)
    bytes_accessed = 4 * (Bp * D_in + D_in * H2 + H2
                          + H2 * A_pad + A_pad + Bp * A_pad)

    out = pl.pallas_call(
        actor_critic_kernel,
        out_shape=jax.ShapeDtypeStruct((Bp, A_pad), jnp.float32),
        grid=grid,
        in_specs=[
            pl.BlockSpec((block_b, D_in), lambda i: (i, 0)),   # state tile streams
            pl.BlockSpec((D_in, H2), lambda i: (0, 0)),        # weights stay resident
            pl.BlockSpec((1, H2), lambda i: (0, 0)),
            pl.BlockSpec((H2, A_pad), lambda i: (0, 0)),
            pl.BlockSpec((1, A_pad), lambda i: (0, 0)),
        ],
        out_specs=pl.BlockSpec((block_b, A_pad), lambda i: (i, 0)),
        compiler_params=pltpu.CompilerParams(
            dimension_semantics=("parallel",),      # megacore / v7x 2-TC sharding
            vmem_limit_bytes=32 << 20),             # safe on v5e/v6e/v7x
        cost_estimate=pl.CostEstimate(flops=int(flops), transcendentals=0,
                                      bytes_accessed=int(bytes_accessed)),
    )(x, w1, b1, w2, b2)

    # Slice the lane-packed output back into (pi, v); drop batch padding.
    return out[:B, :n_actions], out[:B, n_actions:n_actions + 1]


# --------------------------------------------------------------------------- #
# Parameter init (shapes match the PyTorch nn.Linear layers, stored [in, out])
# --------------------------------------------------------------------------- #
def init_params(key, input_dims, hidden_dims, n_actions):
    ks = jax.random.split(key, 8)
    s_in = 1.0 / jnp.sqrt(jnp.float32(input_dims))
    s_h = 1.0 / jnp.sqrt(jnp.float32(hidden_dims))
    u = jax.random.uniform
    return {
        "w_pi1": u(ks[0], (input_dims, hidden_dims), jnp.float32, -s_in, s_in),
        "b_pi1": u(ks[1], (1, hidden_dims), jnp.float32, -s_in, s_in),
        "w_v1":  u(ks[2], (input_dims, hidden_dims), jnp.float32, -s_in, s_in),
        "b_v1":  u(ks[3], (1, hidden_dims), jnp.float32, -s_in, s_in),
        "w_pi":  u(ks[4], (hidden_dims, n_actions), jnp.float32, -s_h, s_h),
        "b_pi":  u(ks[5], (1, n_actions), jnp.float32, -s_h, s_h),
        "w_v":   u(ks[6], (hidden_dims, 1), jnp.float32, -s_h, s_h),
        "b_v":   u(ks[7], (1, 1), jnp.float32, -s_h, s_h),
    }


# --------------------------------------------------------------------------- #
# Reference (exact original-module semantics in f32)
# --------------------------------------------------------------------------- #
def reference_forward_f32(state, p):
    pi1 = jnp.maximum(state @ p["w_pi1"] + p["b_pi1"], 0.0)
    v1 = jnp.maximum(state @ p["w_v1"] + p["b_v1"], 0.0)
    return pi1 @ p["w_pi"] + p["b_pi"], v1 @ p["w_v"] + p["b_v"]


# --------------------------------------------------------------------------- #
if __name__ == "__main__":
    key = jax.random.PRNGKey(0)
    k_param, k_state, k_state2 = jax.random.split(key, 3)

    batch, input_dims, hidden_dims, n_actions = 8, 16, 32, 4

    params = init_params(k_param, input_dims, hidden_dims, n_actions)
    packed = pack_params(params)

    # --- small batch: single whole-array block ---
    state = jax.random.normal(k_state, (batch, input_dims), jnp.float32)
    pi, v = actor_critic_forward(state, packed, n_actions)
    jax.block_until_ready((pi, v))
    assert pi.shape == (batch, n_actions)
    assert v.shape == (batch, 1)

    pi_f, v_f = reference_forward_f32(state, params)
    assert jnp.allclose(pi, pi_f, atol=1e-4, rtol=1e-4)
    assert jnp.allclose(v, v_f, atol=1e-4, rtol=1e-4)

    # --- non-divisible batch: exercises the cdiv grid + padding path ---
    batch2 = 300
    state2 = jax.random.normal(k_state2, (batch2, input_dims), jnp.float32)
    pi2, v2 = actor_critic_forward(state2, packed, n_actions, block_b=128)
    jax.block_until_ready((pi2, v2))
    assert pi2.shape == (batch2, n_actions)
    assert v2.shape == (batch2, 1)

    pi2_f, v2_f = reference_forward_f32(state2, params)
    assert jnp.allclose(pi2, pi2_f, atol=1e-4, rtol=1e-4)
    assert jnp.allclose(v2, v2_f, atol=1e-4, rtol=1e-4)

    print("KERNEL_OK")
</pallas_src>

<mosaic_0001>
module attributes {stable_mosaic.version = 11 : i64} {
  func.func @actor_critic_kernel(%arg0: i32, %arg1: memref<8x16xf32, #tpu.memory_space<vmem>>, %arg2: memref<16x64xf32, #tpu.memory_space<vmem>>, %arg3: memref<1x64xf32, #tpu.memory_space<vmem>>, %arg4: memref<64x8xf32, #tpu.memory_space<vmem>>, %arg5: memref<1x8xf32, #tpu.memory_space<vmem>>, %arg6: memref<8x8xf32, #tpu.memory_space<vmem>>) attributes {dimension_semantics = [#tpu.dimension_semantics<parallel>], iteration_bounds = array<i64: 1>, scalar_prefetch = 0 : i64, scratch_operands = 0 : i64, tpu.core_type = #tpu.core_type<tc>, window_params = [{transform_indices = @transform_0, window_bounds = array<i64: 8, 16>}, {pipeline_mode = #tpu.pipeline_mode<synchronous>, transform_indices = @transform_1, window_bounds = array<i64: 16, 64>}, {pipeline_mode = #tpu.pipeline_mode<synchronous>, transform_indices = @transform_2, window_bounds = array<i64: 1, 64>}, {pipeline_mode = #tpu.pipeline_mode<synchronous>, transform_indices = @transform_3, window_bounds = array<i64: 64, 8>}, {pipeline_mode = #tpu.pipeline_mode<synchronous>, transform_indices = @transform_4, window_bounds = array<i64: 1, 8>}, {transform_indices = @transform_5, window_bounds = array<i64: 8, 8>}]} {
    %c0 = arith.constant 0 : index
    %c0_0 = arith.constant 0 : index
    %0 = vector.load %arg1[%c0, %c0_0] : memref<8x16xf32, #tpu.memory_space<vmem>>, vector<8x16xf32>
    %c0_1 = arith.constant 0 : index
    %c0_2 = arith.constant 0 : index
    %1 = vector.load %arg2[%c0_1, %c0_2] : memref<16x64xf32, #tpu.memory_space<vmem>>, vector<16x64xf32>
    %cst = arith.constant dense<0.000000e+00> : vector<8x64xf32>
    %2 = tpu.matmul %0, %1, %cst {dimension_numbers = #tpu.dot_dimension_numbers<[1], [0], [0], [1], [0, 0, 1, 1], [], []>} : vector<8x16xf32>, vector<16x64xf32>, vector<8x64xf32> -> vector<8x64xf32>
    %c0_3 = arith.constant 0 : index
    %c0_4 = arith.constant 0 : index
    %3 = vector.load %arg3[%c0_3, %c0_4] : memref<1x64xf32, #tpu.memory_space<vmem>>, vector<1x64xf32>
    %4 = vector.broadcast %3 : vector<1x64xf32> to vector<8x64xf32>
    %5 = arith.addf %2, %4 : vector<8x64xf32>
    %cst_5 = arith.constant 0.000000e+00 : f32
    %6 = vector.broadcast %cst_5 : f32 to vector<8x64xf32>
    %7 = arith.maximumf %5, %6 : vector<8x64xf32>
    %c0_6 = arith.constant 0 : index
    %c0_7 = arith.constant 0 : index
    %8 = vector.load %arg4[%c0_6, %c0_7] : memref<64x8xf32, #tpu.memory_space<vmem>>, vector<64x8xf32>
    %cst_8 = arith.constant dense<0.000000e+00> : vector<8x8xf32>
    %9 = tpu.matmul %7, %8, %cst_8 {dimension_numbers = #tpu.dot_dimension_numbers<[1], [0], [0], [1], [0, 0, 1, 1], [], []>} : vector<8x64xf32>, vector<64x8xf32>, vector<8x8xf32> -> vector<8x8xf32>
    %c0_9 = arith.constant 0 : index
    %c0_10 = arith.constant 0 : index
    %10 = vector.load %arg5[%c0_9, %c0_10] : memref<1x8xf32, #tpu.memory_space<vmem>>, vector<1x8xf32>
    %11 = vector.broadcast %10 : vector<1x8xf32> to vector<8x8xf32>
    %12 = arith.addf %9, %11 : vector<8x8xf32>
    %c0_11 = arith.constant 0 : index
    %c0_12 = arith.constant 0 : index
    %13 = vector.load %arg6[%c0_11, %c0_12] : memref<8x8xf32, #tpu.memory_space<vmem>>, vector<8x8xf32>
    tpu.vector_store %arg6[%c0_11, %c0_12], %12 {strides = array<i32>} : memref<8x8xf32, #tpu.memory_space<vmem>>, vector<8x8xf32>,
    return
  }
  func.func @transform_0(%arg0: i32) -> (i32, i32) {
    %c0_i32 = arith.constant 0 : i32
    %c0_i32_0 = arith.constant 0 : i32
    return %arg0, %c0_i32 : i32, i32
  }
  func.func @transform_1(%arg0: i32) -> (i32, i32) {
    %c0_i32 = arith.constant 0 : i32
    %c0_i32_0 = arith.constant 0 : i32
    %c0_i32_1 = arith.constant 0 : i32
    return %c0_i32, %c0_i32_0 : i32, i32
  }
  func.func @transform_2(%arg0: i32) -> (i32, i32) {
    %c0_i32 = arith.constant 0 : i32
    %c0_i32_0 = arith.constant 0 : i32
    %c0_i32_1 = arith.constant 0 : i32
    return %c0_i32, %c0_i32_0 : i32, i32
  }
  func.func @transform_3(%arg0: i32) -> (i32, i32) {
    %c0_i32 = arith.constant 0 : i32
    %c0_i32_0 = arith.constant 0 : i32
    %c0_i32_1 = arith.constant 0 : i32
    return %c0_i32, %c0_i32_0 : i32, i32
  }
  func.func @transform_4(%arg0: i32) -> (i32, i32) {
    %c0_i32 = arith.constant 0 : i32
    %c0_i32_0 = arith.constant 0 : i32
    %c0_i32_1 = arith.constant 0 : i32
    return %c0_i32, %c0_i32_0 : i32, i32
  }
  func.func @transform_5(%arg0: i32) -> (i32, i32) {
    %c0_i32 = arith.constant 0 : i32
    %c0_i32_0 = arith.constant 0 : i32
    return %arg0, %c0_i32 : i32, i32
  }
}

</mosaic_0001>

<llo_original>
// kernel: tpu_custom_call.1
$region0: #{tpu_custom_call.1}
  #allocation0 [shape = 'u32[]', space=smem, size = 0x4, offset = 0x4, fixed_abs, tag = 'smem constant byte address 0x4 - core index']
  #allocation1 [shape = 'u32[144,128]{1,0:T(1,128)}', space=vmem, size = 0x12000, scoped, tag = 'internal scratch']
  %s0 = inlined_call_operand.vmem [shape: f32[8,16], index: 0, kind: input, shape index: {}]
  %s1 = inlined_call_operand.vmem [shape: f32[16,64], index: 1, kind: input, shape index: {}]
  %s2 = inlined_call_operand.vmem [shape: f32[1,64], index: 2, kind: input, shape index: {}]
  %s3 = inlined_call_operand.vmem [shape: f32[64,8], index: 3, kind: input, shape index: {}]
  %s4 = inlined_call_operand.vmem [shape: f32[1,8], index: 4, kind: input, shape index: {}]
  %s5 = inlined_call_operand.hbm [shape: f32[8,8], index: 5, kind: output, shape index: {}]
  %s6 = sld [smem:[#allocation0]]
  $region30: #{tpu_custom_call.1} parent=0
    _
  %s8 = ssub.s32 1, %s6
  %s9 = scalar_select 0, %s8, %s6
  $region1: #{tpu_custom_call.1} parent=0
    #allocation2 [shape = 'u8[4096]{0}', space=vmem, size = 0x1000, scoped, tag = 'output window, operand 0, single buffered']
    #allocation3 [shape = 's32[1]{0}', space=sflag, size = 0x4, scoped, tag = 'scoped memory for tpu_custom_call.1']
    %10 = vsyncpa [#allocation3], 0
    // Predicated region
    $region2: #{tpu_custom_call.1} parent=1 // pred_check
      _
    $region3: #{tpu_custom_call.1} parent=1 // pred_check_branch
      %12 = sbr.rel (0) target = $region5
    $region4: #{tpu_custom_call.1} parent=1 // pred_region
      _
    $region5: #{tpu_custom_call.1} parent=1 // pred_fallthru
      _
    // Predicated region
    $region6: #{tpu_custom_call.1} parent=1 // pred_check
      _
    $region7: #{tpu_custom_call.1} parent=1 // pred_check_branch
      %14 = sbr.rel (0) target = $region9
    $region8: #{tpu_custom_call.1} parent=1 // pred_region
      _
    $region9: #{tpu_custom_call.1} parent=1 // pred_fallthru
      _
    // Predicated region
    $region10: #{tpu_custom_call.1} parent=1 // pred_check
      _
    $region11: #{tpu_custom_call.1} parent=1 // pred_check_branch
      %16 = sbr.rel (0) target = $region13
    $region12: #{tpu_custom_call.1} parent=1 // pred_region
      _
    $region13: #{tpu_custom_call.1} parent=1 // pred_fallthru
      _
    // Predicated region
    $region14: #{tpu_custom_call.1} parent=1 // pred_check
      _
    $region15: #{tpu_custom_call.1} parent=1 // pred_check_branch
      %18 = sbr.rel (0) target = $region17
    $region16: #{tpu_custom_call.1} parent=1 // pred_region
      _
    $region17: #{tpu_custom_call.1} parent=1 // pred_fallthru
      _
    // Predicated region
    $region18: #{tpu_custom_call.1} parent=1 // pred_check
      _
    $region19: #{tpu_custom_call.1} parent=1 // pred_check_branch
      %20 = sbr.rel (0) target = $region21
    $region20: #{tpu_custom_call.1} parent=1 // pred_region
      _
    $region21: #{tpu_custom_call.1} parent=1 // pred_fallthru
      _
    %v21 = vld [vmem:[%s0] sm:$0xff]
    %v22 = vld [vmem:[%s1] sm:$0xff]
    %v23 = vld [vmem:[%s1 + $0x8] sm:$0xff]
    %v24 = vld [vmem:[%s2] sm:$0x1]
    %v26 = vlaneseq
    %v27 = vshrl.u32 %v26, 7
    %v28 = vsub.s32 0, %v27
    %v29 = vrot.slane %v24, %v28
    %vm31 = vcmask 130048
    %v33 = vsel %vm31, %v21, 0
    %35 = vmatprep.subr.mxu0 0.0
    %36 = vmatpush1.msra.mxu0 %v22
    %37 = vmatprep.subr.mxu0 0.0
    %38 = vmatpush1.msra.mxu0 %v23
    %39 = vmatprep.subr.mxu0 0.0
    %40 = vmatpush1.msra.mxu0 0.0
    %41 = vmatprep.subr.mxu0 0.0
    %42 = vmatpush1.msra.mxu0 0.0
    %43 = vmatprep.subr.mxu0 0.0
    %44 = vmatpush1.msra.mxu0 0.0
    %45 = vmatprep.subr.mxu0 0.0
    %46 = vmatpush1.msra.mxu0 0.0
    %47 = vmatprep.subr.mxu0 0.0
    %48 = vmatpush1.msra.mxu0 0.0
    %49 = vmatprep.subr.mxu0 0.0
    %50 = vmatpush1.msra.mxu0 0.0
    %51 = vmatprep.subr.mxu0 0.0
    %52 = vmatpush1.msra.mxu0 0.0
    %53 = vmatprep.subr.mxu0 0.0
    %54 = vmatpush1.msra.mxu0 0.0
    %55 = vmatprep.subr.mxu0 0.0
    %56 = vmatpush1.msra.mxu0 0.0
    %57 = vmatprep.subr.mxu0 0.0
    %58 = vmatpush1.msra.mxu0 0.0
    %59 = vmatprep.subr.mxu0 0.0
    %60 = vmatpush1.msra.mxu0 0.0
    %61 = vmatprep.subr.mxu0 0.0
    %62 = vmatpush1.msra.mxu0 0.0
    %63 = vmatprep.subr.mxu0 0.0
    %64 = vmatpush1.msra.mxu0 0.0
    %65 = vmatprep.subr.mxu0 0.0
    %66 = vmatpush1.msra.mxu0 0.0
    %67 = vmatprep.subr.mxu0 0.0
    %68 = vmatpush1.msra.mxu0 0.0
    %69 = vmatprep.subr.mxu0 0.0
    %70 = vmatpush1.msra.mxu0 0.0
    %71 = vmatprep.subr.mxu0 0.0
    %72 = vmatpush1.msra.mxu0 0.0
    %73 = vmatprep.subr.mxu0 0.0
    %74 = vmatpush1.msra.mxu0 0.0
    %75 = vmatprep.subr.mxu0 0.0
    %76 = vmatpush1.msra.mxu0 0.0
    %77 = vmatprep.subr.mxu0 0.0
    %78 = vmatpush1.msra.mxu0 0.0
    %79 = vmatprep.subr.mxu0 0.0
    %80 = vmatpush1.msra.mxu0 0.0
    %81 = vmatprep.subr.mxu0 0.0
    %82 = vmatpush1.msra.mxu0 0.0
    %83 = vmatprep.subr.mxu0 0.0
    %84 = vmatpush1.msra.mxu0 0.0
    %85 = vmatprep.subr.mxu0 0.0
    %86 = vmatpush1.msra.mxu0 0.0
    %87 = vmatprep.subr.mxu0 0.0
    %88 = vmatpush1.msra.mxu0 0.0
    %89 = vmatprep.subr.mxu0 0.0
    %90 = vmatpush1.msra.mxu0 0.0
    %91 = vmatprep.subr.mxu0 0.0
    %92 = vmatpush1.msra.mxu0 0.0
    %93 = vmatprep.subr.mxu0 0.0
    %94 = vmatpush1.msra.mxu0 0.0
    %95 = vmatprep.subr.mxu0 0.0
    %96 = vmatpush1.msra.mxu0 0.0
    %97 = vmatprep.subr.mxu0 0.0
    %98 = vmatpush1.msra.mxu0 0.0
    %99 = vmatprep.mubr.f32.mxu0 0.0
    %100 = vmatmul.mubr.f32.gmra.mrb[0].mxu0 %v33
    %v101 = vpop.f32.mrb[0].mxu0
    %v102 = vadd.f32 %v29, %v101
    %v103 = vpop.f32.mrb[0].mxu0
    %104 = vdwg.mxu0
    %v105 = vmax.f32 %v102, 0.0
    %v106 = vld [vmem:[%s3] sm:$0xff]
    %v107 = vld [vmem:[%s3 + $0x8] sm:$0xff]
    %v108 = vld [vmem:[%s3 + $0x10] sm:$0xff]
    %v109 = vld [vmem:[%s3 + $0x18] sm:$0xff]
    %v110 = vld [vmem:[%s3 + $0x20] sm:$0xff]
    %v111 = vld [vmem:[%s3 + $0x28] sm:$0xff]
    %v112 = vld [vmem:[%s3 + $0x30] sm:$0xff]
    %v113 = vld [vmem:[%s3 + $0x38] sm:$0xff]
    %v114 = vld [vmem:[%s4] sm:$0x1]
    %v116 = vlaneseq
    %v117 = vshrl.u32 %v116, 7
    %v118 = vsub.s32 0, %v117
    %v119 = vrot.slane %v114, %v118
    %vm121 = vcmask 523264
    %v123 = vsel %vm121, %v105, 0
    %125 = vmatprep.subr.mxu0 0.0
    %126 = vmatpush1.msra.mxu0 %v106
    %127 = vmatprep.subr.mxu0 0.0
    %128 = vmatpush1.msra.mxu0 %v107
    %129 = vmatprep.subr.mxu0 0.0
    %130 = vmatpush1.msra.mxu0 %v108
    %131 = vmatprep.subr.mxu0 0.0
    %132 = vmatpush1.msra.mxu0 %v109
    %133 = vmatprep.subr.mxu0 0.0
    %134 = vmatpush1.msra.mxu0 %v110
    %135 = vmatprep.subr.mxu0 0.0
    %136 = vmatpush1.msra.mxu0 %v111
    %137 = vmatprep.subr.mxu0 0.0
    %138 = vmatpush1.msra.mxu0 %v112
    %139 = vmatprep.subr.mxu0 0.0
    %140 = vmatpush1.msra.mxu0 %v113
    %141 = vmatprep.subr.mxu0 0.0
    %142 = vmatpush1.msra.mxu0 0.0
    %143 = vmatprep.subr.mxu0 0.0
    %144 = vmatpush1.msra.mxu0 0.0
    %145 = vmatprep.subr.mxu0 0.0
    %146 = vmatpush1.msra.mxu0 0.0
    %147 = vmatprep.subr.mxu0 0.0
    %148 = vmatpush1.msra.mxu0 0.0
    %149 = vmatprep.subr.mxu0 0.0
    %150 = vmatpush1.msra.mxu0 0.0
    %151 = vmatprep.subr.mxu0 0.0
    %152 = vmatpush1.msra.mxu0 0.0
    %153 = vmatprep.subr.mxu0 0.0
    %154 = vmatpush1.msra.mxu0 0.0
    %155 = vmatprep.subr.mxu0 0.0
    %156 = vmatpush1.msra.mxu0 0.0
    %157 = vmatprep.subr.mxu0 0.0
    %158 = vmatpush1.msra.mxu0 0.0
    %159 = vmatprep.subr.mxu0 0.0
    %160 = vmatpush1.msra.mxu0 0.0
    %161 = vmatprep.subr.mxu0 0.0
    %162 = vmatpush1.msra.mxu0 0.0
    %163 = vmatprep.subr.mxu0 0.0
    %164 = vmatpush1.msra.mxu0 0.0
    %165 = vmatprep.subr.mxu0 0.0
    %166 = vmatpush1.msra.mxu0 0.0
    %167 = vmatprep.subr.mxu0 0.0
    %168 = vmatpush1.msra.mxu0 0.0
    %169 = vmatprep.subr.mxu0 0.0
    %170 = vmatpush1.msra.mxu0 0.0
    %171 = vmatprep.subr.mxu0 0.0
    %172 = vmatpush1.msra.mxu0 0.0
    %173 = vmatprep.subr.mxu0 0.0
    %174 = vmatpush1.msra.mxu0 0.0
    %175 = vmatprep.subr.mxu0 0.0
    %176 = vmatpush1.msra.mxu0 0.0
    %177 = vmatprep.subr.mxu0 0.0
    %178 = vmatpush1.msra.mxu0 0.0
    %179 = vmatprep.subr.mxu0 0.0
    %180 = vmatpush1.msra.mxu0 0.0
    %181 = vmatprep.subr.mxu0 0.0
    %182 = vmatpush1.msra.mxu0 0.0
    %183 = vmatprep.subr.mxu0 0.0
    %184 = vmatpush1.msra.mxu0 0.0
    %185 = vmatprep.subr.mxu0 0.0
    %186 = vmatpush1.msra.mxu0 0.0
    %187 = vmatprep.subr.mxu0 0.0
    %188 = vmatpush1.msra.mxu0 0.0
    %189 = vmatprep.mubr.f32.mxu0 0.0
    %190 = vmatmul.mubr.f32.gmra.mrb[0].mxu0 %v123
    %v191 = vpop.f32.mrb[0].mxu0
    %v192 = vadd.f32 %v119, %v191
    %v193 = vpop.f32.mrb[0].mxu0
    %194 = vdwg.mxu0
    %vm195 = vcmask 64512
    %196 = vst.msk [vmem:[#allocation2] sm:$0xff] %vm195, %v192
    // Predicated region
    $region22: #{tpu_custom_call.1} parent=1 // pred_check
      _
    $region23: #{tpu_custom_call.1} parent=1 // pred_check_branch
      %198 = sbr.rel (0) target = $region25
    $region24: #{tpu_custom_call.1} parent=1 // pred_region
      %s200 = ssub.s32 128, 128
      %201 = vsyncadd [#allocation3], %s200
      %s203 = sshll.u32 [#allocation2], 4
      %s204 = int_to_ptr.vmem [resolvable:$true] %s203
      %206 = dma.vmem_to_hbm [thread:$0]  %s204, 128, %s5, [#allocation3]
    $region25: #{tpu_custom_call.1} parent=1 // pred_fallthru
      _
    // Predicated region
    $region26: #{tpu_custom_call.1} parent=1 // pred_check
      _
    $region27: #{tpu_custom_call.1} parent=1 // pred_check_branch
      %208 = sbr.rel (0) target = $region29
    $region28: #{tpu_custom_call.1} parent=1 // pred_region
      %209 = dma.done [#allocation3], 128
    $region29: #{tpu_custom_call.1} parent=1 // pred_fallthru
      _
    %210 = vsyncpa [#allocation3], 1

</llo_original>
